<compile_context>
chip_gen: v5e
topology: v5e:2x2
jax: 0.10.0
libtpu: 0.0.40
codegen_flags: <defaults>
</compile_context>

<pallas_src>
import functools

import jax
import jax.numpy as jnp
import numpy as np
from jax.experimental import pallas as pl
from jax.experimental.pallas import tpu as pltpu

_MIB = 1024 * 1024


# ---------------------------------------------------------------------------
# In-kernel math helpers (only ops Mosaic lowers).
# ---------------------------------------------------------------------------
def _erf_approx(x):
    # Abramowitz & Stegun 7.1.26 erf polynomial; exp + approx reciprocal use the EUP slot.
    # TODO(synk): switch to lax.erf if/when Mosaic lowers erf_p natively.
    a1, a2, a3, a4, a5 = 0.254829592, -0.284496736, 1.421413741, -1.453152027, 1.061405429
    p = 0.3275911
    sgn = jnp.where(x >= 0.0, 1.0, -1.0)
    ax = jnp.abs(x)
    t = pl.reciprocal(1.0 + p * ax, approx=True)
    poly = ((((a5 * t + a4) * t + a3) * t + a2) * t + a1) * t
    return sgn * (1.0 - poly * jnp.exp(-ax * ax))


def _gelu_exact(x):
    # nn.GELU() default = exact (erf-based) GELU.
    # TODO(synk): evaluate this polynomial in bf16 on v6e/v7x (bf16 VALUs); keep f32 on v5e.
    return 0.5 * x * (1.0 + _erf_approx(x * (1.0 / np.sqrt(2.0))))


def _layernorm(x, g, b, eps=1e-5):
    mu = jnp.mean(x, axis=-1, keepdims=True)
    var = jnp.mean((x - mu) ** 2, axis=-1, keepdims=True)
    return (x - mu) * jax.lax.rsqrt(var + eps) * g + b


# ---------------------------------------------------------------------------
# Generation-aware budgets + one-time feature probe.
# ---------------------------------------------------------------------------
def _hw_budget():
    """Returns (vmem_limit_bytes, row_tile_cap) derived from the TPU generation."""
    try:
        vmem_phys = int(pltpu.get_tpu_info().vmem_capacity_bytes)
    except Exception:
        vmem_phys = None  # hardware probe only; fall through to conservative default
    if vmem_phys is None:
        vmem_phys = 64 * _MIB            # assume v7x (64 MiB / TensorCore)
    if vmem_phys <= 64 * _MIB:
        return 48 * _MIB, 128            # v7x: leave headroom for pipeline buffers / scratch
    return 100 * _MIB, 256               # v5e / v6e: 128 MiB physical -> bigger tiles pay off


@functools.lru_cache(maxsize=1)
def _buffered_single_ok():
    """One-time feature check: can grid-invariant weight blocks be single-buffered?"""
    if not hasattr(pl, "Buffered"):
        return False

    def _probe_kernel(w_ref, o_ref):
        o_ref[...] = w_ref[...] * 2.0

    try:
        fn = pl.pallas_call(
            _probe_kernel,
            out_shape=jax.ShapeDtypeStruct((16, 128), jnp.float32),
            grid=(2,),
            in_specs=[pl.BlockSpec((8, 128), lambda i: (0, 0),
                                   pipeline_mode=pl.Buffered(1))],
            out_specs=pl.BlockSpec((8, 128), lambda i: (i, 0)),
        )
        jax.jit(fn).lower(jax.ShapeDtypeStruct((8, 128), jnp.float32))
        return True
    except Exception:
        # Narrow scope: only this dummy probe is guarded, never the real kernel.
        return False


def _weight_spec(shape):
    n = len(shape)
    index_map = lambda *_: (0,) * n      # block index constant across the grid
    if _buffered_single_ok():
        # constant block index -> double buffering is pure VMEM waste (matters on v7x)
        return pl.BlockSpec(shape, index_map, pipeline_mode=pl.Buffered(1))
    return pl.BlockSpec(shape, index_map)


# ---------------------------------------------------------------------------
# Tiling choices.
# ---------------------------------------------------------------------------
def _row_tile(n_rows, cap):
    if n_rows <= cap:
        return n_rows
    for t in range(cap - cap % 8, 7, -8):
        if n_rows % t == 0:
            return t
    return n_rows


def _choose_tiles(B, S, row_cap):
    # query-row tile: divisor of S, multiple of 8 unless it is the full sequence
    tq = S
    if S > row_cap:
        for t in range(row_cap, 7, -8):
            if S % t == 0:
                tq = t
                break
    # Swin regime (small windows): batch several windows per grid step so each step sees
    # ~row_cap rows (amortizes per-step overhead and MXU weight pushes).
    nw = 1
    if tq % 8 == 0:
        target = max(1, row_cap // tq)
        for d in range(min(B, target), 0, -1):
            if B % d == 0:
                nw = d
                break
    return nw, tq


# ---------------------------------------------------------------------------
# Stage A: LayerNorm1 + K/V projection, once per row.
# ---------------------------------------------------------------------------
def _ln_kv_kernel(x_ref, g1_ref, b1_ref, wk_ref, bk_ref, wv_ref, bv_ref, k_ref, v_ref):
    xn = _layernorm(x_ref[...].astype(jnp.float32), g1_ref[...], b1_ref[...])
    xnb = xn.astype(jnp.bfloat16)
    k = jnp.dot(xnb, wk_ref[...], preferred_element_type=jnp.float32) + bk_ref[...]
    v = jnp.dot(xnb, wv_ref[...], preferred_element_type=jnp.float32) + bv_ref[...]
    k_ref[...] = k.astype(jnp.bfloat16)
    v_ref[...] = v.astype(jnp.bfloat16)


def _project_kv(x, g1, b1, wk, bk, wv, bv, vmem_limit, row_cap):
    B, S, D = x.shape
    R = B * S
    tr = _row_tile(R, 2 * row_cap)
    x2 = x.reshape(R, D)

    def row_spec():
        return pl.BlockSpec((tr, D), lambda i: (i, 0))

    k2, v2 = pl.pallas_call(
        _ln_kv_kernel,
        out_shape=(jax.ShapeDtypeStruct((R, D), jnp.bfloat16),
                   jax.ShapeDtypeStruct((R, D), jnp.bfloat16)),
        grid_spec=pltpu.PrefetchScalarGridSpec(
            num_scalar_prefetch=0,
            grid=(R // tr,),
            in_specs=[row_spec(),
                      _weight_spec((1, D)), _weight_spec((1, D)),      # norm1 gamma/beta
                      _weight_spec((D, D)), _weight_spec((1, D)),      # Wk, bk
                      _weight_spec((D, D)), _weight_spec((1, D))],     # Wv, bv
            out_specs=(row_spec(), row_spec()),
        ),
        compiler_params=pltpu.CompilerParams(
            dimension_semantics=("parallel",),
            vmem_limit_bytes=vmem_limit,
        ),
    )(x2, g1, b1, wk, bk, wv, bv)
    return k2.reshape(B, S, D), v2.reshape(B, S, D)


# ---------------------------------------------------------------------------
# Stage B: attention (vs precomputed K/V) + output projection + FFN.
# ---------------------------------------------------------------------------
def _swin_main_kernel(num_heads,
                      x_ref, k_ref, v_ref,
                      g1_ref, b1_ref, wq_ref, bq_ref, wo_ref, bo_ref,
                      g2_ref, b2_ref, w1_ref, bf1_ref, w2_ref, bf2_ref,
                      o_ref, ctx_s):
    nw, tq, D = x_ref.shape
    H = num_heads
    hd = D // H
    R = nw * tq
    bf16 = jnp.bfloat16

    x = x_ref[...].astype(jnp.float32).reshape(R, D)           # original rows (residual)
    xn = _layernorm(x, g1_ref[...], b1_ref[...])
    # Wq / bq are pre-scaled by 1/sqrt(hd) host-side -> no per-score scaling pass.
    q = jnp.dot(xn.astype(bf16), wq_ref[...],
                preferred_element_type=jnp.float32) + bq_ref[...]
    q3 = q.reshape(nw, tq, D).astype(bf16)

    k3 = k_ref[...]                                             # (nw, S, D) bf16, precomputed
    v3 = v_ref[...]

    # TODO(synk): for very long S, add a KV-tile grid axis with flash-style online softmax
    # instead of materializing the full (tq, S) score matrix per head.
    for h in range(H):                                          # static unroll over heads
        lo, hi = h * hd, (h + 1) * hd
        s = jnp.einsum('bqd,bkd->bqk', q3[:, :, lo:hi], k3[:, :, lo:hi],
                       preferred_element_type=jnp.float32)      # (nw, tq, S)
        s = s - jnp.max(s, axis=-1, keepdims=True)
        p = jnp.exp(s)
        p = p * pl.reciprocal(jnp.sum(p, axis=-1, keepdims=True), approx=True)
        ctx_s[:, :, lo:hi] = jnp.einsum('bqk,bkd->bqd', p.astype(bf16), v3[:, :, lo:hi],
                                        preferred_element_type=jnp.float32)

    # ONE full-depth (R,D)@(D,D) output projection instead of H hd-deep matmuls.
    attn = jnp.dot(ctx_s[...].reshape(R, D).astype(bf16), wo_ref[...],
                   preferred_element_type=jnp.float32) + bo_ref[...]
    x1 = x + attn                                               # residual 1

    x2n = _layernorm(x1, g2_ref[...], b2_ref[...])
    h1 = jnp.dot(x2n.astype(bf16), w1_ref[...],
                 preferred_element_type=jnp.float32) + bf1_ref[...]
    h1 = _gelu_exact(h1)
    h2 = jnp.dot(h1.astype(bf16), w2_ref[...],
                 preferred_element_type=jnp.float32) + bf2_ref[...]

    o_ref[...] = (x1 + h2).reshape(nw, tq, D).astype(o_ref.dtype)   # residual 2


def _build_main_call(B, S, D, num_heads, nw, tq, out_dtype, vmem_limit):
    kernel = functools.partial(_swin_main_kernel, num_heads)
    row_block = pl.BlockSpec((nw, tq, D), lambda bi, qi: (bi, qi, 0))
    seq_block = pl.BlockSpec((nw, S, D), lambda bi, qi: (bi, 0, 0))
    # TODO(synk): for D >= 1024 on v7x, tile W1/W2 over the 4*D hidden dim (extra grid axis
    # or pltpu.emit_pipeline) instead of holding both FFN weights whole in VMEM.
    return pl.pallas_call(
        kernel,
        out_shape=jax.ShapeDtypeStruct((B, S, D), out_dtype),
        grid_spec=pltpu.PrefetchScalarGridSpec(
            num_scalar_prefetch=0,
            grid=(B // nw, S // tq),
            in_specs=[
                row_block,                                      # x (query rows + residual)
                seq_block, seq_block,                           # K, V (precomputed, bf16)
                _weight_spec((1, D)), _weight_spec((1, D)),     # norm1 gamma / beta
                _weight_spec((D, D)), _weight_spec((1, D)),     # Wq (pre-scaled), bq
                _weight_spec((D, D)), _weight_spec((1, D)),     # Wo, bo
                _weight_spec((1, D)), _weight_spec((1, D)),     # norm2 gamma / beta
                _weight_spec((D, 4 * D)), _weight_spec((1, 4 * D)),  # ff[0] weight/bias
                _weight_spec((4 * D, D)), _weight_spec((1, D)),      # ff[2] weight/bias
            ],
            out_specs=pl.BlockSpec((nw, tq, D), lambda bi, qi: (bi, qi, 0)),
            scratch_shapes=[pltpu.VMEM((nw, tq, D), jnp.float32)],   # per-head ctx slab
        ),
        compiler_params=pltpu.CompilerParams(
            # No cross-iteration state -> both axes stay "parallel" so the v7x 2-TC
            # megacore can shard (B//nw, S//tq).
            dimension_semantics=("parallel", "parallel"),
            vmem_limit_bytes=vmem_limit,
        ),
    )


# ---------------------------------------------------------------------------
# Wrapper
# ---------------------------------------------------------------------------
def _prepare_params(params, num_heads):
    """Split QKV, fold 1/sqrt(hd) into the Q projection, cast matmul weights to bf16."""
    (g1, b1, wqkv, bqkv, wo, bo, g2, b2, w1, bf1, w2, bf2) = params
    D = wo.shape[0]
    hd = D // num_heads
    scale = 1.0 / float(np.sqrt(hd))
    bf16 = jnp.bfloat16
    wq = (wqkv[:, :D] * scale).astype(bf16)
    bq = bqkv[:, :D] * scale
    wk = wqkv[:, D:2 * D].astype(bf16)
    bk = bqkv[:, D:2 * D]
    wv = wqkv[:, 2 * D:].astype(bf16)
    bv = bqkv[:, 2 * D:]
    return dict(g1=g1, b1=b1, wq=wq, bq=bq, wk=wk, bk=bk, wv=wv, bv=bv,
                wo=wo.astype(bf16), bo=bo, g2=g2, b2=b2,
                w1=w1.astype(bf16), bf1=bf1, w2=w2.astype(bf16), bf2=bf2)


def swin_block(x, params, num_heads):
    B, S, D = x.shape
    assert D % num_heads == 0
    vmem_limit, row_cap = _hw_budget()
    nw, tq = _choose_tiles(B, S, row_cap)
    p = _prepare_params(params, num_heads)

    # Stage A: LayerNorm1 + K/V projection, once per row (not once per query tile).
    k3, v3 = _project_kv(x, p["g1"], p["b1"], p["wk"], p["bk"], p["wv"], p["bv"],
                         vmem_limit, row_cap)

    # Stage B: attention + output projection + FFN, row-tiled / window-batched.
    fn = _build_main_call(B, S, D, num_heads, nw, tq, x.dtype, vmem_limit)
    return fn(x, k3, v3,
              p["g1"], p["b1"], p["wq"], p["bq"], p["wo"], p["bo"],
              p["g2"], p["b2"], p["w1"], p["bf1"], p["w2"], p["bf2"])


# ---------------------------------------------------------------------------
# Deterministic synthetic parameters (shapes follow the PyTorch module;
# matrices stored transposed relative to torch's (out, in) convention).
# ---------------------------------------------------------------------------
def init_params(key, dim):
    ks = jax.random.split(key, 12)
    f32 = jnp.float32

    def unif(k, shape, lim):
        return jax.random.uniform(k, shape, f32, -lim, lim)

    g1 = jnp.ones((1, dim), f32) + 0.05 * jax.random.normal(ks[0], (1, dim), f32)
    b1 = 0.05 * jax.random.normal(ks[1], (1, dim), f32)
    g2 = jnp.ones((1, dim), f32) + 0.05 * jax.random.normal(ks[2], (1, dim), f32)
    b2 = 0.05 * jax.random.normal(ks[3], (1, dim), f32)

    lim_qkv = np.sqrt(6.0 / (dim + 3 * dim))             # xavier_uniform, torch MHA
    wqkv = unif(ks[4], (dim, 3 * dim), lim_qkv)           # = in_proj_weight.T
    bqkv = 0.02 * jax.random.normal(ks[5], (1, 3 * dim), f32)
    lim_o = np.sqrt(1.0 / dim)
    wo = unif(ks[6], (dim, dim), lim_o)                   # = out_proj.weight.T
    bo = 0.02 * jax.random.normal(ks[7], (1, dim), f32)

    lim1 = np.sqrt(1.0 / dim)
    w1 = unif(ks[8], (dim, 4 * dim), lim1)                # = ff[0].weight.T
    bf1 = unif(ks[9], (1, 4 * dim), lim1)
    lim2 = np.sqrt(1.0 / (4 * dim))
    w2 = unif(ks[10], (4 * dim, dim), lim2)               # = ff[2].weight.T
    bf2 = unif(ks[11], (1, dim), lim2)

    return (g1, b1, wqkv, bqkv, wo, bo, g2, b2, w1, bf1, w2, bf2)


# ---------------------------------------------------------------------------
# Pure-JAX f32 reference (mirrors the PyTorch forward).
# ---------------------------------------------------------------------------
def reference(x, params, num_heads):
    (g1, b1, wqkv, bqkv, wo, bo, g2, b2, w1, bf1, w2, bf2) = params
    B, S, D = x.shape
    hd = D // num_heads

    def ln(v, g, b):
        mu = v.mean(-1, keepdims=True)
        var = ((v - mu) ** 2).mean(-1, keepdims=True)
        return (v - mu) / jnp.sqrt(var + 1e-5) * g + b

    xn = ln(x, g1, b1)
    qkv = xn @ wqkv + bqkv
    q, k, v = jnp.split(qkv, 3, axis=-1)
    q = q / np.sqrt(hd)
    qh = q.reshape(B, S, num_heads, hd).transpose(0, 2, 1, 3)
    kh = k.reshape(B, S, num_heads, hd).transpose(0, 2, 1, 3)
    vh = v.reshape(B, S, num_heads, hd).transpose(0, 2, 1, 3)
    s = jnp.einsum('bhqd,bhkd->bhqk', qh, kh)
    p = jax.nn.softmax(s, axis=-1)
    o = jnp.einsum('bhqk,bhkd->bhqd', p, vh).transpose(0, 2, 1, 3).reshape(B, S, D)
    attn = o @ wo + bo
    x1 = x + attn
    x2n = ln(x1, g2, b2)
    h = x2n @ w1 + bf1
    h = 0.5 * h * (1.0 + jax.scipy.special.erf(h / np.sqrt(2.0)))
    h = h @ w2 + bf2
    return x1 + h


if __name__ == "__main__":
    B, S, D, H = 2, 8, 32, 4
    key = jax.random.PRNGKey(0)
    kx, kp = jax.random.split(key)
    x = jax.random.normal(kx, (B, S, D), jnp.float32)
    params = init_params(kp, D)

    out = jax.block_until_ready(swin_block(x, params, H))
    ref = reference(x, params, H)

    assert out.shape == (B, S, D), out.shape
    assert np.isfinite(np.asarray(out)).all()
    err = float(jnp.max(jnp.abs(out - ref)))
    # bf16 MXU inputs + EUP approx reciprocals vs a pure-f32 reference (documented trade-off)
    assert err < 5e-2, f"max abs err vs reference: {err}"
    print("KERNEL_OK")
</pallas_src>

<mosaic_0001>
module attributes {stable_mosaic.version = 11 : i64} {
  func.func @_ln_kv_kernel(%arg0: i32, %arg1: memref<16x32xf32, #tpu.memory_space<vmem>>, %arg2: memref<1x32xf32, #tpu.memory_space<vmem>>, %arg3: memref<1x32xf32, #tpu.memory_space<vmem>>, %arg4: memref<32x32xbf16, #tpu.memory_space<vmem>>, %arg5: memref<1x32xf32, #tpu.memory_space<vmem>>, %arg6: memref<32x32xbf16, #tpu.memory_space<vmem>>, %arg7: memref<1x32xf32, #tpu.memory_space<vmem>>, %arg8: memref<16x32xbf16, #tpu.memory_space<vmem>>, %arg9: memref<16x32xbf16, #tpu.memory_space<vmem>>) attributes {dimension_semantics = [#tpu.dimension_semantics<parallel>], iteration_bounds = array<i64: 1>, scalar_prefetch = 0 : i64, scratch_operands = 0 : i64, tpu.core_type = #tpu.core_type<tc>, window_params = [{transform_indices = @transform_0, window_bounds = array<i64: 16, 32>}, {pipeline_mode = #tpu.pipeline_mode<synchronous>, transform_indices = @transform_1, window_bounds = array<i64: 1, 32>}, {pipeline_mode = #tpu.pipeline_mode<synchronous>, transform_indices = @transform_2, window_bounds = array<i64: 1, 32>}, {pipeline_mode = #tpu.pipeline_mode<synchronous>, transform_indices = @transform_3, window_bounds = array<i64: 32, 32>}, {pipeline_mode = #tpu.pipeline_mode<synchronous>, transform_indices = @transform_4, window_bounds = array<i64: 1, 32>}, {pipeline_mode = #tpu.pipeline_mode<synchronous>, transform_indices = @transform_5, window_bounds = array<i64: 32, 32>}, {pipeline_mode = #tpu.pipeline_mode<synchronous>, transform_indices = @transform_6, window_bounds = array<i64: 1, 32>}, {transform_indices = @transform_7, window_bounds = array<i64: 16, 32>}, {transform_indices = @transform_8, window_bounds = array<i64: 16, 32>}]} {
    %c0 = arith.constant 0 : index
    %c0_0 = arith.constant 0 : index
    %0 = vector.load %arg1[%c0, %c0_0] : memref<16x32xf32, #tpu.memory_space<vmem>>, vector<16x32xf32>
    %c0_1 = arith.constant 0 : index
    %c0_2 = arith.constant 0 : index
    %1 = vector.load %arg2[%c0_1, %c0_2] : memref<1x32xf32, #tpu.memory_space<vmem>>, vector<1x32xf32>
    %c0_3 = arith.constant 0 : index
    %c0_4 = arith.constant 0 : index
    %2 = vector.load %arg3[%c0_3, %c0_4] : memref<1x32xf32, #tpu.memory_space<vmem>>, vector<1x32xf32>
    %cst = arith.constant dense<0.000000e+00> : vector<16xf32>
    %3 = vector.multi_reduction <add>, %0, %cst [1] : vector<16x32xf32> to vector<16xf32>
    %4 = vector.shape_cast %3 : vector<16xf32> to vector<16x1xf32>
    %cst_5 = arith.constant 3.200000e+01 : f32
    %5 = vector.broadcast %cst_5 : f32 to vector<16x1xf32>
    %6 = arith.divf %4, %5 : vector<16x1xf32>
    %7 = vector.broadcast %6 : vector<16x1xf32> to vector<16x32xf32>
    %8 = arith.subf %0, %7 : vector<16x32xf32>
    %9 = arith.mulf %8, %8 : vector<16x32xf32>
    %cst_6 = arith.constant dense<0.000000e+00> : vector<16xf32>
    %10 = vector.multi_reduction <add>, %9, %cst_6 [1] : vector<16x32xf32> to vector<16xf32>
    %11 = vector.shape_cast %10 : vector<16xf32> to vector<16x1xf32>
    %cst_7 = arith.constant 3.200000e+01 : f32
    %12 = vector.broadcast %cst_7 : f32 to vector<16x1xf32>
    %13 = arith.divf %11, %12 : vector<16x1xf32>
    %14 = vector.broadcast %6 : vector<16x1xf32> to vector<16x32xf32>
    %15 = arith.subf %0, %14 : vector<16x32xf32>
    %cst_8 = arith.constant 9.99999974E-6 : f32
    %16 = vector.broadcast %cst_8 : f32 to vector<16x1xf32>
    %17 = arith.addf %13, %16 : vector<16x1xf32>
    %18 = math.rsqrt %17 : vector<16x1xf32>
    %19 = vector.broadcast %18 : vector<16x1xf32> to vector<16x32xf32>
    %20 = arith.mulf %15, %19 : vector<16x32xf32>
    %21 = vector.broadcast %1 : vector<1x32xf32> to vector<16x32xf32>
    %22 = arith.mulf %20, %21 : vector<16x32xf32>
    %23 = vector.broadcast %2 : vector<1x32xf32> to vector<16x32xf32>
    %24 = arith.addf %22, %23 : vector<16x32xf32>
    %25 = arith.truncf %24 : vector<16x32xf32> to vector<16x32xbf16>
    %c0_9 = arith.constant 0 : index
    %c0_10 = arith.constant 0 : index
    %26 = vector.load %arg4[%c0_9, %c0_10] : memref<32x32xbf16, #tpu.memory_space<vmem>>, vector<32x32xbf16>
    %cst_11 = arith.constant dense<0.000000e+00> : vector<16x32xf32>
    %27 = tpu.matmul %25, %26, %cst_11 {dimension_numbers = #tpu.dot_dimension_numbers<[1], [0], [0], [1], [0, 0, 1, 1], [], []>} : vector<16x32xbf16>, vector<32x32xbf16>, vector<16x32xf32> -> vector<16x32xf32>
    %c0_12 = arith.constant 0 : index
    %c0_13 = arith.constant 0 : index
    %28 = vector.load %arg5[%c0_12, %c0_13] : memref<1x32xf32, #tpu.memory_space<vmem>>, vector<1x32xf32>
    %29 = vector.broadcast %28 : vector<1x32xf32> to vector<16x32xf32>
    %30 = arith.addf %27, %29 : vector<16x32xf32>
    %c0_14 = arith.constant 0 : index
    %c0_15 = arith.constant 0 : index
    %31 = vector.load %arg6[%c0_14, %c0_15] : memref<32x32xbf16, #tpu.memory_space<vmem>>, vector<32x32xbf16>
    %cst_16 = arith.constant dense<0.000000e+00> : vector<16x32xf32>
    %32 = tpu.matmul %25, %31, %cst_16 {dimension_numbers = #tpu.dot_dimension_numbers<[1], [0], [0], [1], [0, 0, 1, 1], [], []>} : vector<16x32xbf16>, vector<32x32xbf16>, vector<16x32xf32> -> vector<16x32xf32>
    %c0_17 = arith.constant 0 : index
    %c0_18 = arith.constant 0 : index
    %33 = vector.load %arg7[%c0_17, %c0_18] : memref<1x32xf32, #tpu.memory_space<vmem>>, vector<1x32xf32>
    %34 = vector.broadcast %33 : vector<1x32xf32> to vector<16x32xf32>
    %35 = arith.addf %32, %34 : vector<16x32xf32>
    %36 = arith.truncf %30 : vector<16x32xf32> to vector<16x32xbf16>
    %c0_19 = arith.constant 0 : index
    %c0_20 = arith.constant 0 : index
    %37 = vector.load %arg8[%c0_19, %c0_20] : memref<16x32xbf16, #tpu.memory_space<vmem>>, vector<16x32xbf16>
    tpu.vector_store %arg8[%c0_19, %c0_20], %36 {strides = array<i32>} : memref<16x32xbf16, #tpu.memory_space<vmem>>, vector<16x32xbf16>,
    %38 = arith.truncf %35 : vector<16x32xf32> to vector<16x32xbf16>
    %c0_21 = arith.constant 0 : index
    %c0_22 = arith.constant 0 : index
    %39 = vector.load %arg9[%c0_21, %c0_22] : memref<16x32xbf16, #tpu.memory_space<vmem>>, vector<16x32xbf16>
    tpu.vector_store %arg9[%c0_21, %c0_22], %38 {strides = array<i32>} : memref<16x32xbf16, #tpu.memory_space<vmem>>, vector<16x32xbf16>,
    return
  }
  func.func @transform_0(%arg0: i32) -> (i32, i32) {
    %c0_i32 = arith.constant 0 : i32
    %c0_i32_0 = arith.constant 0 : i32
    return %arg0, %c0_i32 : i32, i32
  }
  func.func @transform_1(%arg0: i32) -> (i32, i32) {
    %c0_i32 = arith.constant 0 : i32
    %c0_i32_0 = arith.constant 0 : i32
    %c0_i32_1 = arith.constant 0 : i32
    return %c0_i32, %c0_i32_0 : i32, i32
  }
  func.func @transform_2(%arg0: i32) -> (i32, i32) {
    %c0_i32 = arith.constant 0 : i32
    %c0_i32_0 = arith.constant 0 : i32
    %c0_i32_1 = arith.constant 0 : i32
    return %c0_i32, %c0_i32_0 : i32, i32
  }
  func.func @transform_3(%arg0: i32) -> (i32, i32) {
    %c0_i32 = arith.constant 0 : i32
    %c0_i32_0 = arith.constant 0 : i32
    %c0_i32_1 = arith.constant 0 : i32
    return %c0_i32, %c0_i32_0 : i32, i32
  }
  func.func @transform_4(%arg0: i32) -> (i32, i32) {
    %c0_i32 = arith.constant 0 : i32
    %c0_i32_0 = arith.constant 0 : i32
    %c0_i32_1 = arith.constant 0 : i32
    return %c0_i32, %c0_i32_0 : i32, i32
  }
  func.func @transform_5(%arg0: i32) -> (i32, i32) {
    %c0_i32 = arith.constant 0 : i32
    %c0_i32_0 = arith.constant 0 : i32
    %c0_i32_1 = arith.constant 0 : i32
    return %c0_i32, %c0_i32_0 : i32, i32
  }
  func.func @transform_6(%arg0: i32) -> (i32, i32) {
    %c0_i32 = arith.constant 0 : i32
    %c0_i32_0 = arith.constant 0 : i32
    %c0_i32_1 = arith.constant 0 : i32
    return %c0_i32, %c0_i32_0 : i32, i32
  }
  func.func @transform_7(%arg0: i32) -> (i32, i32) {
    %c0_i32 = arith.constant 0 : i32
    %c0_i32_0 = arith.constant 0 : i32
    return %arg0, %c0_i32 : i32, i32
  }
  func.func @transform_8(%arg0: i32) -> (i32, i32) {
    %c0_i32 = arith.constant 0 : i32
    %c0_i32_0 = arith.constant 0 : i32
    return %arg0, %c0_i32 : i32, i32
  }
}

</mosaic_0001>

<llo_original>
// kernel: tpu_custom_call.1
$region0: #{tpu_custom_call.1}
  #allocation0 [shape = 'u32[]', space=smem, size = 0x4, offset = 0x4, fixed_abs, tag = 'smem constant byte address 0x4 - core index']
  #allocation1 [shape = 'u32[72,128]{1,0:T(1,128)}', space=vmem, size = 0x9000, scoped, tag = 'internal scratch']
  %s0 = inlined_call_operand.hbm [shape: f32[16,32], index: 0, kind: input, shape index: {}]
  %s1 = inlined_call_operand.hbm [shape: f32[1,32], index: 1, kind: input, shape index: {}]
  %s2 = inlined_call_operand.vmem [shape: f32[1,32], index: 2, kind: input, shape index: {}]
  %s3 = inlined_call_operand.hbm [shape: bf16[32,32], index: 3, kind: input, shape index: {}]
  %s4 = inlined_call_operand.vmem [shape: f32[1,32], index: 4, kind: input, shape index: {}]
  %s5 = inlined_call_operand.hbm [shape: bf16[32,32], index: 5, kind: input, shape index: {}]
  %s6 = inlined_call_operand.vmem [shape: f32[1,32], index: 6, kind: input, shape index: {}]
  %s7 = inlined_call_operand.hbm [shape: bf16[16,32], index: 7, kind: output, shape index: {0}]
  %s8 = inlined_call_operand.hbm [shape: bf16[16,32], index: 8, kind: output, shape index: {1}]
  %9 = xla_tuple %s7, %s8
  %s10 = sld [smem:[#allocation0]]
  $region62: #{tpu_custom_call.1} parent=0
    _
  %s12 = ssub.s32 1, %s10
  %s13 = scalar_select 0, %s12, %s10
  $region1: #{tpu_custom_call.1} parent=0
    #allocation2 [shape = 'u8[8192]{0}', space=vmem, size = 0x2000, scoped, tag = 'input window, operand 0, single buffered']
    #allocation3 [shape = 's32[1]{0}', space=sflag, size = 0x4, scoped, tag = 'scoped memory for tpu_custom_call.1']
    #allocation4 [shape = 's32[1]{0}', space=sflag, size = 0x4, scoped, tag = 'scoped memory for tpu_custom_call.1']
    #allocation5 [shape = 'u8[512]{0}', space=vmem, size = 0x400, scoped, tag = 'input window, operand 1, single buffered']
    #allocation6 [shape = 's32[1]{0}', space=sflag, size = 0x4, scoped, tag = 'scoped memory for tpu_custom_call.1']
    #allocation7 [shape = 'u8[8192]{0}', space=vmem, size = 0x2000, scoped, tag = 'input window, operand 3, single buffered']
    #allocation8 [shape = 'u8[8192]{0}', space=vmem, size = 0x2000, scoped, tag = 'input window, operand 5, single buffered']
    #allocation9 [shape = 's32[1]{0}', space=sflag, size = 0x4, scoped, tag = 'scoped memory for tpu_custom_call.1']
    #allocation10 [shape = 'u8[4096]{0}', space=vmem, size = 0x1000, scoped, tag = 'output window, operand 0, single buffered']
    #allocation11 [shape = 'u8[4096]{0}', space=vmem, size = 0x1000, scoped, tag = 'output window, operand 1, single buffered']
    #allocation12 [shape = 's32[1]{0}', space=sflag, size = 0x4, scoped, tag = 'scoped memory for tpu_custom_call.1']
    %14 = vsyncpa [#allocation3], 0
    %15 = vsyncpa [#allocation6], 0
    %16 = vsyncpa [#allocation9], 0
    %17 = vsyncpa [#allocation4], 0
    %18 = vsyncpa [#allocation12], 0
    // Predicated region
    $region2: #{tpu_custom_call.1} parent=1 // pred_check
      _
    $region3: #{tpu_custom_call.1} parent=1 // pred_check_branch
      %20 = sbr.rel (0) target = $region5
    $region4: #{tpu_custom_call.1} parent=1 // pred_region
      %22 = vsyncadd [#allocation3], 0
      %s23 = sshll.u32 %s0, 4
      %s24 = int_to_ptr.hbm [resolvable:$true] %s23
      %s25 = sshll.u32 [#allocation2], 4
      %s26 = int_to_ptr.vmem [resolvable:$true] %s25
      %31 = dma.hbm_to_vmem [thread:$0]  %s24, 256, %s26, [#allocation3], 128, 128, 8
    $region5: #{tpu_custom_call.1} parent=1 // pred_fallthru
      _
    // Predicated region
    $region6: #{tpu_custom_call.1} parent=1 // pred_check
      _
    $region7: #{tpu_custom_call.1} parent=1 // pred_check_branch
      %33 = sbr.rel (0) target = $region9
    $region8: #{tpu_custom_call.1} parent=1 // pred_region
      %35 = vsyncadd [#allocation6], 0
      %s37 = sshll.u32 %s1, 4
      %s38 = int_to_ptr.hbm [resolvable:$true] %s37
      %s39 = sshll.u32 [#allocation5], 4
      %s40 = int_to_ptr.vmem [resolvable:$true] %s39
      %42 = dma.hbm_to_vmem [thread:$0]  %s38, 16, %s40, [#allocation6]
    $region9: #{tpu_custom_call.1} parent=1 // pred_fallthru
      _
    // Predicated region
    $region10: #{tpu_custom_call.1} parent=1 // pred_check
      _
    $region11: #{tpu_custom_call.1} parent=1 // pred_check_branch
      %44 = sbr.rel (0) target = $region13
    $region12: #{tpu_custom_call.1} parent=1 // pred_region
      _
    $region13: #{tpu_custom_call.1} parent=1 // pred_fallthru
      _
    // Predicated region
    $region14: #{tpu_custom_call.1} parent=1 // pred_check
      _
    $region15: #{tpu_custom_call.1} parent=1 // pred_check_branch
      %46 = sbr.rel (0) target = $region17
    $region16: #{tpu_custom_call.1} parent=1 // pred_region
      %48 = vsyncadd [#allocation6], 0
      %s49 = sshll.u32 %s3, 4
      %s50 = int_to_ptr.hbm [resolvable:$true] %s49
      %s51 = sshll.u32 [#allocation7], 4
      %s52 = int_to_ptr.vmem [resolvable:$true] %s51
      %57 = dma.hbm_to_vmem [thread:$0]  %s50, 256, %s52, [#allocation6], 64, 64, 4
    $region17: #{tpu_custom_call.1} parent=1 // pred_fallthru
      _
    // Predicated region
    $region18: #{tpu_custom_call.1} parent=1 // pred_check
      _
    $region19: #{tpu_custom_call.1} parent=1 // pred_check_branch
      %59 = sbr.rel (0) target = $region21
    $region20: #{tpu_custom_call.1} parent=1 // pred_region
      _
    $region21: #{tpu_custom_call.1} parent=1 // pred_fallthru
      _
    // Predicated region
    $region22: #{tpu_custom_call.1} parent=1 // pred_check
      _
    $region23: #{tpu_custom_call.1} parent=1 // pred_check_branch
      %61 = sbr.rel (0) target = $region25
    $region24: #{tpu_custom_call.1} parent=1 // pred_region
      %63 = vsyncadd [#allocation9], 0
      %s64 = sshll.u32 %s5, 4
      %s65 = int_to_ptr.hbm [resolvable:$true] %s64
      %s66 = sshll.u32 [#allocation8], 4
      %s67 = int_to_ptr.vmem [resolvable:$true] %s66
      %72 = dma.hbm_to_vmem [thread:$0]  %s65, 256, %s67, [#allocation9], 64, 64, 4
    $region25: #{tpu_custom_call.1} parent=1 // pred_fallthru
      _
    // Predicated region
    $region26: #{tpu_custom_call.1} parent=1 // pred_check
      _
    $region27: #{tpu_custom_call.1} parent=1 // pred_check_branch
      %74 = sbr.rel (0) target = $region29
    $region28: #{tpu_custom_call.1} parent=1 // pred_region
      _
    $region29: #{tpu_custom_call.1} parent=1 // pred_fallthru
      _
    // Predicated region
    $region30: #{tpu_custom_call.1} parent=1 // pred_check
      _
    $region31: #{tpu_custom_call.1} parent=1 // pred_check_branch
      %76 = sbr.rel (0) target = $region33
    $region32: #{tpu_custom_call.1} parent=1 // pred_region
      %78 = dma.done [#allocation3], 256
    $region33: #{tpu_custom_call.1} parent=1 // pred_fallthru
      _
    // Predicated region
    $region34: #{tpu_custom_call.1} parent=1 // pred_check
      _
    $region35: #{tpu_custom_call.1} parent=1 // pred_check_branch
      %80 = sbr.rel (0) target = $region37
    $region36: #{tpu_custom_call.1} parent=1 // pred_region
      %82 = dma.done [#allocation6], 16
    $region37: #{tpu_custom_call.1} parent=1 // pred_fallthru
      _
    // Predicated region
    $region38: #{tpu_custom_call.1} parent=1 // pred_check
      _
    $region39: #{tpu_custom_call.1} parent=1 // pred_check_branch
      %84 = sbr.rel (0) target = $region41
    $region40: #{tpu_custom_call.1} parent=1 // pred_region
      %86 = dma.done [#allocation6], 256
    $region41: #{tpu_custom_call.1} parent=1 // pred_fallthru
      _
    // Predicated region
    $region42: #{tpu_custom_call.1} parent=1 // pred_check
      _
    $region43: #{tpu_custom_call.1} parent=1 // pred_check_branch
      %88 = sbr.rel (0) target = $region45
    $region44: #{tpu_custom_call.1} parent=1 // pred_region
      %90 = dma.done [#allocation9], 256
    $region45: #{tpu_custom_call.1} parent=1 // pred_fallthru
      _
    %v92 = vld [vmem:[#allocation2] sm:$0xff]
    %v93 = vld [vmem:[#allocation2 + $0x8] sm:$0xff]
    %v94 = vld [vmem:[#allocation5] sm:$0x1]
    %v95 = vld [vmem:[%s2] sm:$0x1]
    %vm96 = vcmask 261120
    %v97 = vsel %vm96, %v92, 0.0
    %98 = vadd.xlane.f32.xlu0 %v97
    %v99 = vpop.xlane.xlu0 %98
    %v100 = vsel %vm96, %v93, 0.0
    %101 = vadd.xlane.f32.xlu0 %v100
    %v102 = vpop.xlane.xlu0 %101
    %v103 = vrcp.pop 32.0
    %v104 = vmul.f32 32.0, %v103
    %v105 = vsub.f32 1.0, %v104
    %v106 = vmul.f32 %v103, %v105
    %v107 = vadd.f32 %v103, %v106
    %vm108 = vweird.f32 %v103
    %v109 = vsel %vm108, %v103, %v107
    %v110 = vmul.f32 %v99, %v109
    %v111 = vmul.f32 %v102, %v109
    %v112 = vsub.f32 %v92, %v110
    %v113 = vsub.f32 %v93, %v111
    %v114 = vmul.f32 %v112, %v112
    %v115 = vmul.f32 %v113, %v113
    %v116 = vsel %vm96, %v114, 0.0
    %117 = vadd.xlane.f32.xlu0 %v116
    %v118 = vpop.xlane.xlu0 %117
    %v119 = vsel %vm96, %v115, 0.0
    %120 = vadd.xlane.f32.xlu0 %v119
    %v121 = vpop.xlane.xlu0 %120
    %v122 = vmul.f32 %v118, %v109
    %v123 = vmul.f32 %v121, %v109
    %v124 = vadd.f32 %v122, 1e-05
    %v125 = vadd.f32 %v123, 1e-05
    %v126 = vrsqrt.pop %v124
    %v127 = vmul.f32 %v126, %v124
    %v128 = vmul.f32 %v127, %v126
    %v129 = vmul.f32 0.5, %v128
    %v130 = vsub.f32 1.5, %v129
    %v131 = vmul.f32 %v126, %v130
    %vm132 = vweird.f32 %v124
    %vm133 = vweird.f32 %v126
    %vm134 = vmor %vm132, %vm133
    %v135 = vsel %vm134, %v126, %v131
    %v136 = vrsqrt.pop %v125
    %v137 = vmul.f32 %v136, %v125
    %v138 = vmul.f32 %v137, %v136
    %v139 = vmul.f32 0.5, %v138
    %v140 = vsub.f32 1.5, %v139
    %v141 = vmul.f32 %v136, %v140
    %vm142 = vweird.f32 %v125
    %vm143 = vweird.f32 %v136
    %vm144 = vmor %vm142, %vm143
    %v145 = vsel %vm144, %v136, %v141
    %v146 = vmul.f32 %v112, %v135
    %v147 = vmul.f32 %v113, %v145
    %v149 = vperm.slane %v94, 0
    %v151 = vmul.f32 %v146, %v149
    %v152 = vmul.f32 %v147, %v149
    %v154 = vperm.slane %v95, 0
    %v156 = vadd.f32 %v151, %v154
    %v157 = vadd.f32 %v152, %v154
    %v158 = vpack.c.bf16 %v157, %v156
    %v159 = vld [vmem:[#allocation7] sm:$0xf]
    %v160 = vld [vmem:[#allocation7 + $0x4] sm:$0xf]
    %v161 = vld [vmem:[#allocation7 + $0x8] sm:$0xf]
    %v162 = vld [vmem:[#allocation7 + $0xc] sm:$0xf]
    %v163 = vld [vmem:[%s4] sm:$0x1]
    %v165 = vperm.slane %v163, 0
    %v171 = vunpack.c.l.b16 %v159
    %v172 = vunpack.c.l.b16 %v160
    %v173 = vunpack.c.l.b16 %v161
    %v174 = vunpack.c.l.b16 %v162
    %v175 = vpack.c.b16 %v172, %v171
    %v176 = vpack.c.b16 %v174, %v173
    %v180 = vsel %vm96, %v158, 0
    %182 = vmatpush.bf16.msra.mxu0 0
    %183 = vmatpush.bf16.msra.mxu0 0
    %184 = vmatpush.bf16.msra.mxu0 0
    %185 = vmatpush.bf16.msra.mxu0 0
    %186 = vmatpush.bf16.msra.mxu0 0
    %187 = vmatpush.bf16.msra.mxu0 0
    %188 = vmatpush.bf16.msra.mxu0 %v176
    %189 = vmatpush.bf16.msra.mxu0 %v175
    %190 = vmatmul.bf16.gmra.mxu0 %v180
    %v191 = vpop.f32.mrf.mxu0
    %v192 = vadd.f32 %v165, %v191
    %v193 = vpop.f32.mrf.mxu0
    %v194 = vadd.f32 %v165, %v193
    %195 = vdwg.mxu0
    %v196 = vld [vmem:[#allocation8] sm:$0xf]
    %v197 = vld [vmem:[#allocation8 + $0x4] sm:$0xf]
    %v198 = vld [vmem:[#allocation8 + $0x8] sm:$0xf]
    %v199 = vld [vmem:[#allocation8 + $0xc] sm:$0xf]
    %v200 = vld [vmem:[%s6] sm:$0x1]
    %v202 = vperm.slane %v200, 0
    %v208 = vunpack.c.l.b16 %v196
    %v209 = vunpack.c.l.b16 %v197
    %v210 = vunpack.c.l.b16 %v198
    %v211 = vunpack.c.l.b16 %v199
    %v212 = vpack.c.b16 %v209, %v208
    %v213 = vpack.c.b16 %v211, %v210
    %216 = vmatpush.bf16.msra.mxu0 0
    %217 = vmatpush.bf16.msra.mxu0 0
    %218 = vmatpush.bf16.msra.mxu0 0
    %219 = vmatpush.bf16.msra.mxu0 0
    %220 = vmatpush.bf16.msra.mxu0 0
    %221 = vmatpush.bf16.msra.mxu0 0
    %222 = vmatpush.bf16.msra.mxu0 %v213
    %223 = vmatpush.bf16.msra.mxu0 %v212
    %224 = vmatmul.bf16.gmra.mxu0 %v180
    %v225 = vpop.f32.mrf.mxu0
    %v226 = vadd.f32 %v202, %v225
    %v227 = vpop.f32.mrf.mxu0
    %v228 = vadd.f32 %v202, %v227
    %229 = vdwg.mxu0
    %v230 = vpack.c.bf16 %v192, %v192
    %v231 = vpack.c.bf16 %v194, %v194
    %vm232 = vcmask 257024
    %233 = vst.msk [vmem:[#allocation10] sm:$0xf] %vm232, %v230
    %234 = vst.msk [vmem:[#allocation10 + $0x4] sm:$0xf] %vm232, %v231
    %v235 = vpack.c.bf16 %v226, %v226
    %v236 = vpack.c.bf16 %v228, %v228
    %237 = vst.msk [vmem:[#allocation11] sm:$0xf] %vm232, %v235
    %238 = vst.msk [vmem:[#allocation11 + $0x4] sm:$0xf] %vm232, %v236
    // Predicated region
    $region46: #{tpu_custom_call.1} parent=1 // pred_check
      _
    $region47: #{tpu_custom_call.1} parent=1 // pred_check_branch
      %240 = sbr.rel (0) target = $region49
    $region48: #{tpu_custom_call.1} parent=1 // pred_region
      %242 = vsyncadd [#allocation4], 0
      %s243 = sshll.u32 [#allocation10], 4
      %s244 = int_to_ptr.vmem [resolvable:$true] %s243
      %s245 = sshll.u32 %s7, 4
      %s246 = int_to_ptr.hbm [resolvable:$true] %s245
      %251 = dma.vmem_to_hbm [thread:$0]  %s244, 128, %s246, [#allocation4], 64, 64, 4
    $region49: #{tpu_custom_call.1} parent=1 // pred_fallthru
      _
    // Predicated region
    $region50: #{tpu_custom_call.1} parent=1 // pred_check
      _
    $region51: #{tpu_custom_call.1} parent=1 // pred_check_branch
      %253 = sbr.rel (0) target = $region53
    $region52: #{tpu_custom_call.1} parent=1 // pred_region
      %255 = vsyncadd [#allocation12], 0
      %s256 = sshll.u32 [#allocation11], 4
      %s257 = int_to_ptr.vmem [resolvable:$true] %s256
      %s258 = sshll.u32 %s8, 4
      %s259 = int_to_ptr.hbm [resolvable:$true] %s258
      %264 = dma.vmem_to_hbm [thread:$0]  %s257, 128, %s259, [#allocation12], 64, 64, 4
    $region53: #{tpu_custom_call.1} parent=1 // pred_fallthru
      _
    // Predicated region
    $region54: #{tpu_custom_call.1} parent=1 // pred_check
      _
    $region55: #{tpu_custom_call.1} parent=1 // pred_check_branch
      %266 = sbr.rel (0) target = $region57
    $region56: #{tpu_custom_call.1} parent=1 // pred_region
      %268 = dma.done [#allocation4], 128
    $region57: #{tpu_custom_call.1} parent=1 // pred_fallthru
      _
    // Predicated region
    $region58: #{tpu_custom_call.1} parent=1 // pred_check
      _
    $region59: #{tpu_custom_call.1} parent=1 // pred_check_branch
      %270 = sbr.rel (0) target = $region61
    $region60: #{tpu_custom_call.1} parent=1 // pred_region
      %272 = dma.done [#allocation12], 128
    $region61: #{tpu_custom_call.1} parent=1 // pred_fallthru
      _
    %273 = vsyncpa [#allocation3], 1
    %274 = vsyncpa [#allocation6], 1
    %275 = vsyncpa [#allocation9], 1
    %276 = vsyncpa [#allocation4], 1
    %277 = vsyncpa [#allocation12], 1

</llo_original>
